<compile_context>
chip_gen: v5e
topology: v5e:2x2
jax: 0.10.0
libtpu: 0.0.40
codegen_flags: <defaults>
</compile_context>

<pallas_src>
import functools
import math

import jax
import jax.numpy as jnp
from jax.experimental import pallas as pl
from jax.experimental.pallas import tpu as pltpu

_LANE = 128     # lane (last-dim) alignment
_SUBLANE = 8    # sublane (second-to-last-dim) alignment


def _round_up(x, m):
    return ((x + m - 1) // m) * m


def _mlp_fused_kernel(*refs, num_layers, neg_slope, final_act):
    # refs = (x_ref, w0, b0, ..., w_{L-1}, b_{L-1}, o_ref)
    # x_ref: [TILE_N, C0]   w_l: [Cl_p, C(l+1)_p] (bf16 or f32)   b_l: [1, C(l+1)_p] (f32)
    x_ref = refs[0]
    o_ref = refs[-1]
    wb = refs[1:-1]

    h = x_ref[...]
    for l in range(num_layers):
        w = wb[2 * l][...]
        b = wb[2 * l + 1][...]
        # MXU matmul: operands in the weight dtype (bf16 fast path), f32 accum.
        y = jnp.dot(h.astype(w.dtype), w, preferred_element_type=jnp.float32)
        y = y + b                                   # f32 epilogue
        if (l < num_layers - 1) or final_act:
            y = jnp.maximum(y, neg_slope * y)       # LeakyReLU(0.01), single max
        h = y
    o_ref[...] = h.astype(o_ref.dtype)


def init_mlp_params(key, channel_list):
    """Deterministic params mimicking nn.Linear's default uniform init."""
    params = []
    for c_in, c_out in zip(channel_list[:-1], channel_list[1:]):
        key, kw, kb = jax.random.split(key, 3)
        bound = 1.0 / math.sqrt(c_in)
        w = jax.random.uniform(kw, (c_out, c_in), jnp.float32, -bound, bound)
        b = jax.random.uniform(kb, (c_out,), jnp.float32, -bound, bound)
        params.append((w, b))
    return params


def prepare_mlp_params(params, channel_list, param_dtype=jnp.bfloat16):
    """Pre-transpose weights to [C_in, C_out], zero-pad ONLY the internal
    (hidden) channel dims to multiples of 128, and cast weights to the MXU
    operand dtype.  Done once at init time, off the hot path.  The MLP's true
    input/output channel dims are kept as-is so the forward wrapper never
    pads or slices activations.  Biases stay f32 (f32 epilogue)."""
    padded = list(channel_list)
    for i in range(1, len(channel_list) - 1):
        padded[i] = _round_up(channel_list[i], _LANE)

    prepared = []
    for l, (w, b) in enumerate(params):
        c_in, c_out = channel_list[l], channel_list[l + 1]
        cp_in, cp_out = padded[l], padded[l + 1]
        w_t = jnp.zeros((cp_in, cp_out), jnp.float32).at[:c_in, :c_out].set(w.T)
        b_p = jnp.zeros((1, cp_out), jnp.float32).at[0, :c_out].set(b)
        prepared.append((w_t.astype(param_dtype), b_p))
    return prepared, padded


def mlp_forward(x, prepared_params, channel_list,
                disable_final_activation=False, tile_n=None):
    """Fused equivalent of MLP.forward: x [N, C0] -> [N, C_last]."""
    n, c_in = x.shape
    assert c_in == channel_list[0]
    num_layers = len(prepared_params)
    c_out = channel_list[-1]

    # Batch tile: big tiles amortize per-grid-step overhead (~0.35 us each),
    # but keep >= 2 grid steps whenever possible so the "parallel" batch axis
    # can be sharded across both TensorCores on v7x.
    if tile_n is None:
        if n >= 2048:
            tile_n = 1024
        elif n > _SUBLANE:
            tile_n = _round_up(pl.cdiv(n, 2), _SUBLANE)
        else:
            tile_n = _SUBLANE
    tile_n = max(_SUBLANE, _round_up(tile_n, _SUBLANE))
    num_tiles = pl.cdiv(n, tile_n)   # ragged last tile handled by edge masking

    # x at its TRUE shape: last dim == full array dim (legal even if < 128),
    # so no wrapper-side pad copy and no output slice.
    in_specs = [pl.BlockSpec((tile_n, c_in), lambda i: (i, 0))]
    flat_params = []
    for w_t, b_p in prepared_params:
        in_specs.append(pl.BlockSpec(w_t.shape, lambda i: (0, 0)))  # resident
        in_specs.append(pl.BlockSpec(b_p.shape, lambda i: (0, 0)))  # resident
        flat_params.extend([w_t, b_p])

    kernel = functools.partial(
        _mlp_fused_kernel,
        num_layers=num_layers,
        neg_slope=0.01,
        final_act=not disable_final_activation,
    )

    return pl.pallas_call(
        kernel,
        out_shape=jax.ShapeDtypeStruct((n, c_out), x.dtype),
        grid=(num_tiles,),
        in_specs=in_specs,
        out_specs=pl.BlockSpec((tile_n, c_out), lambda i: (i, 0)),
        compiler_params=pltpu.CompilerParams(
            dimension_semantics=("parallel",),
            vmem_limit_bytes=48 * 1024 * 1024,   # allow big tiles, keep v7x headroom
        ),
    )(x, *flat_params)


def mlp_reference(x, params, disable_final_activation=False):
    """Plain-JAX reference with the same math as the PyTorch module."""
    out = x
    n_layers = len(params)
    for i, (w, b) in enumerate(params):
        out = out @ w.T + b
        if not (i == n_layers - 1 and disable_final_activation):
            out = jnp.where(out > 0, out, 0.01 * out)
    return out


if __name__ == "__main__":
    key = jax.random.PRNGKey(0)
    channel_list = [32, 64, 48, 16]   # 3 Linear layers
    k_x1, k_x2, k_p = jax.random.split(key, 3)

    params = init_mlp_params(k_p, channel_list)

    # Exact f32 operand path (validation) and bf16 MXU fast path (default).
    prepared_f32, _ = prepare_mlp_params(params, channel_list, jnp.float32)
    prepared_bf16, _ = prepare_mlp_params(params, channel_list, jnp.bfloat16)

    # Case 1: small batch, single tile, final activation on, f32 exactness.
    x1 = jax.random.normal(k_x1, (8, channel_list[0]), jnp.float32)
    y1 = jax.block_until_ready(
        mlp_forward(x1, prepared_f32, channel_list,
                    disable_final_activation=False))
    ref1 = mlp_reference(x1, params, disable_final_activation=False)
    assert y1.shape == (8, channel_list[-1])
    assert jnp.allclose(y1, ref1, atol=1e-4, rtol=1e-4)

    # Case 2: non-tile-multiple batch -> ragged 2-step grid (both TCs on v7x),
    # bf16 MXU operands with f32 accumulation, final activation disabled.
    x2 = jax.random.normal(k_x2, (300, channel_list[0]), jnp.float32)
    y2 = jax.block_until_ready(
        mlp_forward(x2, prepared_bf16, channel_list,
                    disable_final_activation=True))
    ref2 = mlp_reference(x2, params, disable_final_activation=True)
    assert y2.shape == (300, channel_list[-1])
    assert jnp.allclose(y2, ref2, atol=5e-2, rtol=5e-2)   # bf16 operand tolerance

    print("KERNEL_OK")
</pallas_src>

<mosaic_0001>
module attributes {stable_mosaic.version = 11 : i64} {
  func.func @_mlp_fused_kernel(%arg0: i32, %arg1: memref<8x32xf32, #tpu.memory_space<vmem>>, %arg2: memref<32x128xf32, #tpu.memory_space<vmem>>, %arg3: memref<1x128xf32, #tpu.memory_space<vmem>>, %arg4: memref<128x128xf32, #tpu.memory_space<vmem>>, %arg5: memref<1x128xf32, #tpu.memory_space<vmem>>, %arg6: memref<128x16xf32, #tpu.memory_space<vmem>>, %arg7: memref<1x16xf32, #tpu.memory_space<vmem>>, %arg8: memref<8x16xf32, #tpu.memory_space<vmem>>) attributes {dimension_semantics = [#tpu.dimension_semantics<parallel>], iteration_bounds = array<i64: 1>, scalar_prefetch = 0 : i64, scratch_operands = 0 : i64, tpu.core_type = #tpu.core_type<tc>, window_params = [{transform_indices = @transform_0, window_bounds = array<i64: 8, 32>}, {pipeline_mode = #tpu.pipeline_mode<synchronous>, transform_indices = @transform_1, window_bounds = array<i64: 32, 128>}, {pipeline_mode = #tpu.pipeline_mode<synchronous>, transform_indices = @transform_2, window_bounds = array<i64: 1, 128>}, {pipeline_mode = #tpu.pipeline_mode<synchronous>, transform_indices = @transform_3, window_bounds = array<i64: 128, 128>}, {pipeline_mode = #tpu.pipeline_mode<synchronous>, transform_indices = @transform_4, window_bounds = array<i64: 1, 128>}, {pipeline_mode = #tpu.pipeline_mode<synchronous>, transform_indices = @transform_5, window_bounds = array<i64: 128, 16>}, {pipeline_mode = #tpu.pipeline_mode<synchronous>, transform_indices = @transform_6, window_bounds = array<i64: 1, 16>}, {transform_indices = @transform_7, window_bounds = array<i64: 8, 16>}]} {
    %c0 = arith.constant 0 : index
    %c0_0 = arith.constant 0 : index
    %0 = vector.load %arg1[%c0, %c0_0] : memref<8x32xf32, #tpu.memory_space<vmem>>, vector<8x32xf32>
    %c0_1 = arith.constant 0 : index
    %c0_2 = arith.constant 0 : index
    %1 = vector.load %arg2[%c0_1, %c0_2] : memref<32x128xf32, #tpu.memory_space<vmem>>, vector<32x128xf32>
    %c0_3 = arith.constant 0 : index
    %c0_4 = arith.constant 0 : index
    %2 = vector.load %arg3[%c0_3, %c0_4] : memref<1x128xf32, #tpu.memory_space<vmem>>, vector<1x128xf32>
    %cst = arith.constant dense<0.000000e+00> : vector<8x128xf32>
    %3 = tpu.matmul %0, %1, %cst {dimension_numbers = #tpu.dot_dimension_numbers<[1], [0], [0], [1], [0, 0, 1, 1], [], []>} : vector<8x32xf32>, vector<32x128xf32>, vector<8x128xf32> -> vector<8x128xf32>
    %4 = vector.broadcast %2 : vector<1x128xf32> to vector<8x128xf32>
    %5 = arith.addf %3, %4 : vector<8x128xf32>
    %cst_5 = arith.constant 0.00999999977 : f32
    %6 = vector.broadcast %cst_5 : f32 to vector<8x128xf32>
    %7 = arith.mulf %6, %5 : vector<8x128xf32>
    %8 = arith.maximumf %5, %7 : vector<8x128xf32>
    %c0_6 = arith.constant 0 : index
    %c0_7 = arith.constant 0 : index
    %9 = vector.load %arg4[%c0_6, %c0_7] : memref<128x128xf32, #tpu.memory_space<vmem>>, vector<128x128xf32>
    %c0_8 = arith.constant 0 : index
    %c0_9 = arith.constant 0 : index
    %10 = vector.load %arg5[%c0_8, %c0_9] : memref<1x128xf32, #tpu.memory_space<vmem>>, vector<1x128xf32>
    %cst_10 = arith.constant dense<0.000000e+00> : vector<8x128xf32>
    %11 = tpu.matmul %8, %9, %cst_10 {dimension_numbers = #tpu.dot_dimension_numbers<[1], [0], [0], [1], [0, 0, 1, 1], [], []>} : vector<8x128xf32>, vector<128x128xf32>, vector<8x128xf32> -> vector<8x128xf32>
    %12 = vector.broadcast %10 : vector<1x128xf32> to vector<8x128xf32>
    %13 = arith.addf %11, %12 : vector<8x128xf32>
    %cst_11 = arith.constant 0.00999999977 : f32
    %14 = vector.broadcast %cst_11 : f32 to vector<8x128xf32>
    %15 = arith.mulf %14, %13 : vector<8x128xf32>
    %16 = arith.maximumf %13, %15 : vector<8x128xf32>
    %c0_12 = arith.constant 0 : index
    %c0_13 = arith.constant 0 : index
    %17 = vector.load %arg6[%c0_12, %c0_13] : memref<128x16xf32, #tpu.memory_space<vmem>>, vector<128x16xf32>
    %c0_14 = arith.constant 0 : index
    %c0_15 = arith.constant 0 : index
    %18 = vector.load %arg7[%c0_14, %c0_15] : memref<1x16xf32, #tpu.memory_space<vmem>>, vector<1x16xf32>
    %cst_16 = arith.constant dense<0.000000e+00> : vector<8x16xf32>
    %19 = tpu.matmul %16, %17, %cst_16 {dimension_numbers = #tpu.dot_dimension_numbers<[1], [0], [0], [1], [0, 0, 1, 1], [], []>} : vector<8x128xf32>, vector<128x16xf32>, vector<8x16xf32> -> vector<8x16xf32>
    %20 = vector.broadcast %18 : vector<1x16xf32> to vector<8x16xf32>
    %21 = arith.addf %19, %20 : vector<8x16xf32>
    %cst_17 = arith.constant 0.00999999977 : f32
    %22 = vector.broadcast %cst_17 : f32 to vector<8x16xf32>
    %23 = arith.mulf %22, %21 : vector<8x16xf32>
    %24 = arith.maximumf %21, %23 : vector<8x16xf32>
    %c0_18 = arith.constant 0 : index
    %c0_19 = arith.constant 0 : index
    %25 = vector.load %arg8[%c0_18, %c0_19] : memref<8x16xf32, #tpu.memory_space<vmem>>, vector<8x16xf32>
    tpu.vector_store %arg8[%c0_18, %c0_19], %24 {strides = array<i32>} : memref<8x16xf32, #tpu.memory_space<vmem>>, vector<8x16xf32>,
    return
  }
  func.func @transform_0(%arg0: i32) -> (i32, i32) {
    %c0_i32 = arith.constant 0 : i32
    %c0_i32_0 = arith.constant 0 : i32
    return %arg0, %c0_i32 : i32, i32
  }
  func.func @transform_1(%arg0: i32) -> (i32, i32) {
    %c0_i32 = arith.constant 0 : i32
    %c0_i32_0 = arith.constant 0 : i32
    %c0_i32_1 = arith.constant 0 : i32
    return %c0_i32, %c0_i32_0 : i32, i32
  }
  func.func @transform_2(%arg0: i32) -> (i32, i32) {
    %c0_i32 = arith.constant 0 : i32
    %c0_i32_0 = arith.constant 0 : i32
    %c0_i32_1 = arith.constant 0 : i32
    return %c0_i32, %c0_i32_0 : i32, i32
  }
  func.func @transform_3(%arg0: i32) -> (i32, i32) {
    %c0_i32 = arith.constant 0 : i32
    %c0_i32_0 = arith.constant 0 : i32
    %c0_i32_1 = arith.constant 0 : i32
    return %c0_i32, %c0_i32_0 : i32, i32
  }
  func.func @transform_4(%arg0: i32) -> (i32, i32) {
    %c0_i32 = arith.constant 0 : i32
    %c0_i32_0 = arith.constant 0 : i32
    %c0_i32_1 = arith.constant 0 : i32
    return %c0_i32, %c0_i32_0 : i32, i32
  }
  func.func @transform_5(%arg0: i32) -> (i32, i32) {
    %c0_i32 = arith.constant 0 : i32
    %c0_i32_0 = arith.constant 0 : i32
    %c0_i32_1 = arith.constant 0 : i32
    return %c0_i32, %c0_i32_0 : i32, i32
  }
  func.func @transform_6(%arg0: i32) -> (i32, i32) {
    %c0_i32 = arith.constant 0 : i32
    %c0_i32_0 = arith.constant 0 : i32
    %c0_i32_1 = arith.constant 0 : i32
    return %c0_i32, %c0_i32_0 : i32, i32
  }
  func.func @transform_7(%arg0: i32) -> (i32, i32) {
    %c0_i32 = arith.constant 0 : i32
    %c0_i32_0 = arith.constant 0 : i32
    return %arg0, %c0_i32 : i32, i32
  }
}

</mosaic_0001>

<llo_original>
// kernel: tpu_custom_call.1
$region0: #{tpu_custom_call.1}
  #allocation0 [shape = 'u32[]', space=smem, size = 0x4, offset = 0x4, fixed_abs, tag = 'smem constant byte address 0x4 - core index']
  #allocation1 [shape = 'u32[72,128]{1,0:T(1,128)}', space=vmem, size = 0x9000, scoped, tag = 'internal scratch']
  %s0 = inlined_call_operand.vmem [shape: f32[8,32], index: 0, kind: input, shape index: {}]
  %s1 = inlined_call_operand.hbm [shape: f32[32,128], index: 1, kind: input, shape index: {}]
  %s2 = inlined_call_operand.vmem [shape: f32[1,128], index: 2, kind: input, shape index: {}]
  %s3 = inlined_call_operand.vmem [shape: f32[128,128], index: 3, kind: input, shape index: {}]
  %s4 = inlined_call_operand.vmem [shape: f32[1,128], index: 4, kind: input, shape index: {}]
  %s5 = inlined_call_operand.vmem [shape: f32[128,16], index: 5, kind: input, shape index: {}]
  %s6 = inlined_call_operand.vmem [shape: f32[1,16], index: 6, kind: input, shape index: {}]
  %s7 = inlined_call_operand.hbm [shape: f32[8,16], index: 7, kind: output, shape index: {}]
  %s8 = sld [smem:[#allocation0]]
  $region42: #{tpu_custom_call.1} parent=0
    _
  %s10 = ssub.s32 1, %s8
  %s11 = scalar_select 0, %s10, %s8
  $region1: #{tpu_custom_call.1} parent=0
    #allocation2 [shape = 'u8[16384]{0}', space=vmem, size = 0x4000, scoped, tag = 'input window, operand 1, single buffered']
    #allocation3 [shape = 's32[1]{0}', space=sflag, size = 0x4, scoped, tag = 'scoped memory for tpu_custom_call.1']
    #allocation4 [shape = 's32[1]{0}', space=sflag, size = 0x4, scoped, tag = 'scoped memory for tpu_custom_call.1']
    #allocation5 [shape = 'u8[4096]{0}', space=vmem, size = 0x1000, scoped, tag = 'output window, operand 0, single buffered']
    %12 = vsyncpa [#allocation3], 0
    %13 = vsyncpa [#allocation4], 0
    // Predicated region
    $region2: #{tpu_custom_call.1} parent=1 // pred_check
      _
    $region3: #{tpu_custom_call.1} parent=1 // pred_check_branch
      %15 = sbr.rel (0) target = $region5
    $region4: #{tpu_custom_call.1} parent=1 // pred_region
      _
    $region5: #{tpu_custom_call.1} parent=1 // pred_fallthru
      _
    // Predicated region
    $region6: #{tpu_custom_call.1} parent=1 // pred_check
      _
    $region7: #{tpu_custom_call.1} parent=1 // pred_check_branch
      %17 = sbr.rel (0) target = $region9
    $region8: #{tpu_custom_call.1} parent=1 // pred_region
      %19 = vsyncadd [#allocation3], 0
      %s20 = sshll.u32 %s1, 4
      %s21 = int_to_ptr.hbm [resolvable:$true] %s20
      %s22 = sshll.u32 [#allocation2], 4
      %s23 = int_to_ptr.vmem [resolvable:$true] %s22
      %28 = dma.hbm_to_vmem [thread:$0]  %s21, 512, %s23, [#allocation3], 128, 128, 8
    $region9: #{tpu_custom_call.1} parent=1 // pred_fallthru
      _
    // Predicated region
    $region10: #{tpu_custom_call.1} parent=1 // pred_check
      _
    $region11: #{tpu_custom_call.1} parent=1 // pred_check_branch
      %30 = sbr.rel (0) target = $region13
    $region12: #{tpu_custom_call.1} parent=1 // pred_region
      _
    $region13: #{tpu_custom_call.1} parent=1 // pred_fallthru
      _
    // Predicated region
    $region14: #{tpu_custom_call.1} parent=1 // pred_check
      _
    $region15: #{tpu_custom_call.1} parent=1 // pred_check_branch
      %32 = sbr.rel (0) target = $region17
    $region16: #{tpu_custom_call.1} parent=1 // pred_region
      _
    $region17: #{tpu_custom_call.1} parent=1 // pred_fallthru
      _
    // Predicated region
    $region18: #{tpu_custom_call.1} parent=1 // pred_check
      _
    $region19: #{tpu_custom_call.1} parent=1 // pred_check_branch
      %34 = sbr.rel (0) target = $region21
    $region20: #{tpu_custom_call.1} parent=1 // pred_region
      _
    $region21: #{tpu_custom_call.1} parent=1 // pred_fallthru
      _
    // Predicated region
    $region22: #{tpu_custom_call.1} parent=1 // pred_check
      _
    $region23: #{tpu_custom_call.1} parent=1 // pred_check_branch
      %36 = sbr.rel (0) target = $region25
    $region24: #{tpu_custom_call.1} parent=1 // pred_region
      _
    $region25: #{tpu_custom_call.1} parent=1 // pred_fallthru
      _
    // Predicated region
    $region26: #{tpu_custom_call.1} parent=1 // pred_check
      _
    $region27: #{tpu_custom_call.1} parent=1 // pred_check_branch
      %38 = sbr.rel (0) target = $region29
    $region28: #{tpu_custom_call.1} parent=1 // pred_region
      _
    $region29: #{tpu_custom_call.1} parent=1 // pred_fallthru
      _
    // Predicated region
    $region30: #{tpu_custom_call.1} parent=1 // pred_check
      _
    $region31: #{tpu_custom_call.1} parent=1 // pred_check_branch
      %40 = sbr.rel (0) target = $region33
    $region32: #{tpu_custom_call.1} parent=1 // pred_region
      %42 = dma.done [#allocation3], 512
    $region33: #{tpu_custom_call.1} parent=1 // pred_fallthru
      _
    %v43 = vld [vmem:[%s0] sm:$0xff]
    %v44 = vld [vmem:[#allocation2] sm:$0xff]
    %v45 = vld [vmem:[#allocation2 + $0x8] sm:$0xff]
    %v46 = vld [vmem:[#allocation2 + $0x10] sm:$0xff]
    %v47 = vld [vmem:[#allocation2 + $0x18] sm:$0xff]
    %v48 = vld [vmem:[%s2] sm:$0x1]
    %v50 = vperm.slane %v48, 0
    %vm52 = vcmask 261120
    %v54 = vsel %vm52, %v43, 0
    %56 = vmatpush.msra.mxu0 0.0
    %57 = vmatpush.msra.mxu0 0.0
    %58 = vmatpush.msra.mxu0 0.0
    %59 = vmatpush.msra.mxu0 0.0
    %60 = vmatpush.msra.mxu0 0.0
    %61 = vmatpush.msra.mxu0 0.0
    %62 = vmatpush.msra.mxu0 0.0
    %63 = vmatpush.msra.mxu0 0.0
    %64 = vmatpush.msra.mxu0 0.0
    %65 = vmatpush.msra.mxu0 0.0
    %66 = vmatpush.msra.mxu0 0.0
    %67 = vmatpush.msra.mxu0 0.0
    %68 = vmatpush.msra.mxu0 %v47
    %69 = vmatpush.msra.mxu0 %v46
    %70 = vmatpush.msra.mxu0 %v45
    %71 = vmatpush.msra.mxu0 %v44
    %72 = vmatmul.f32.gmra.mxu0 %v54
    %v73 = vpop.f32.mrf.mxu0
    %v74 = vadd.f32 %v50, %v73
    %75 = vdwg.mxu0
    %v76 = vmul.f32 %v74, 0.01
    %v77 = vmax.f32 %v74, %v76
    %v78 = vld [vmem:[%s3] sm:$0xff]
    %v79 = vld [vmem:[%s3 + $0x8] sm:$0xff]
    %v80 = vld [vmem:[%s3 + $0x10] sm:$0xff]
    %v81 = vld [vmem:[%s3 + $0x18] sm:$0xff]
    %v82 = vld [vmem:[%s3 + $0x20] sm:$0xff]
    %v83 = vld [vmem:[%s3 + $0x28] sm:$0xff]
    %v84 = vld [vmem:[%s3 + $0x30] sm:$0xff]
    %v85 = vld [vmem:[%s3 + $0x38] sm:$0xff]
    %v86 = vld [vmem:[%s3 + $0x40] sm:$0xff]
    %v87 = vld [vmem:[%s3 + $0x48] sm:$0xff]
    %v88 = vld [vmem:[%s3 + $0x50] sm:$0xff]
    %v89 = vld [vmem:[%s3 + $0x58] sm:$0xff]
    %v90 = vld [vmem:[%s3 + $0x60] sm:$0xff]
    %v91 = vld [vmem:[%s3 + $0x68] sm:$0xff]
    %v92 = vld [vmem:[%s3 + $0x70] sm:$0xff]
    %v93 = vld [vmem:[%s3 + $0x78] sm:$0xff]
    %v94 = vld [vmem:[%s4] sm:$0x1]
    %v96 = vperm.slane %v94, 0
    %98 = vmatpush.msra.mxu0 %v93
    %99 = vmatpush.msra.mxu0 %v92
    %100 = vmatpush.msra.mxu0 %v91
    %101 = vmatpush.msra.mxu0 %v90
    %102 = vmatpush.msra.mxu0 %v89
    %103 = vmatpush.msra.mxu0 %v88
    %104 = vmatpush.msra.mxu0 %v87
    %105 = vmatpush.msra.mxu0 %v86
    %106 = vmatpush.msra.mxu0 %v85
    %107 = vmatpush.msra.mxu0 %v84
    %108 = vmatpush.msra.mxu0 %v83
    %109 = vmatpush.msra.mxu0 %v82
    %110 = vmatpush.msra.mxu0 %v81
    %111 = vmatpush.msra.mxu0 %v80
    %112 = vmatpush.msra.mxu0 %v79
    %113 = vmatpush.msra.mxu0 %v78
    %114 = vmatmul.f32.gmra.mxu0 %v77
    %v115 = vpop.f32.mrf.mxu0
    %v116 = vadd.f32 %v96, %v115
    %117 = vdwg.mxu0
    %v118 = vmul.f32 %v116, 0.01
    %v119 = vmax.f32 %v116, %v118
    %v120 = vld [vmem:[%s5] sm:$0xff]
    %v121 = vld [vmem:[%s5 + $0x8] sm:$0xff]
    %v122 = vld [vmem:[%s5 + $0x10] sm:$0xff]
    %v123 = vld [vmem:[%s5 + $0x18] sm:$0xff]
    %v124 = vld [vmem:[%s5 + $0x20] sm:$0xff]
    %v125 = vld [vmem:[%s5 + $0x28] sm:$0xff]
    %v126 = vld [vmem:[%s5 + $0x30] sm:$0xff]
    %v127 = vld [vmem:[%s5 + $0x38] sm:$0xff]
    %v128 = vld [vmem:[%s5 + $0x40] sm:$0xff]
    %v129 = vld [vmem:[%s5 + $0x48] sm:$0xff]
    %v130 = vld [vmem:[%s5 + $0x50] sm:$0xff]
    %v131 = vld [vmem:[%s5 + $0x58] sm:$0xff]
    %v132 = vld [vmem:[%s5 + $0x60] sm:$0xff]
    %v133 = vld [vmem:[%s5 + $0x68] sm:$0xff]
    %v134 = vld [vmem:[%s5 + $0x70] sm:$0xff]
    %v135 = vld [vmem:[%s5 + $0x78] sm:$0xff]
    %v136 = vld [vmem:[%s6] sm:$0x1]
    %v138 = vperm.slane %v136, 0
    %140 = vmatpush.msra.mxu0 %v135
    %141 = vmatpush.msra.mxu0 %v134
    %142 = vmatpush.msra.mxu0 %v133
    %143 = vmatpush.msra.mxu0 %v132
    %144 = vmatpush.msra.mxu0 %v131
    %145 = vmatpush.msra.mxu0 %v130
    %146 = vmatpush.msra.mxu0 %v129
    %147 = vmatpush.msra.mxu0 %v128
    %148 = vmatpush.msra.mxu0 %v127
    %149 = vmatpush.msra.mxu0 %v126
    %150 = vmatpush.msra.mxu0 %v125
    %151 = vmatpush.msra.mxu0 %v124
    %152 = vmatpush.msra.mxu0 %v123
    %153 = vmatpush.msra.mxu0 %v122
    %154 = vmatpush.msra.mxu0 %v121
    %155 = vmatpush.msra.mxu0 %v120
    %156 = vmatmul.f32.gmra.mxu0 %v119
    %v157 = vpop.f32.mrf.mxu0
    %v158 = vadd.f32 %v138, %v157
    %159 = vdwg.mxu0
    %v160 = vmul.f32 %v158, 0.01
    %v161 = vmax.f32 %v158, %v160
    %vm162 = vcmask 130048
    %163 = vst.msk [vmem:[#allocation5] sm:$0xff] %vm162, %v161
    // Predicated region
    $region34: #{tpu_custom_call.1} parent=1 // pred_check
      _
    $region35: #{tpu_custom_call.1} parent=1 // pred_check_branch
      %165 = sbr.rel (0) target = $region37
    $region36: #{tpu_custom_call.1} parent=1 // pred_region
      %167 = vsyncadd [#allocation4], 0
      %s169 = sshll.u32 [#allocation5], 4
      %s170 = int_to_ptr.vmem [resolvable:$true] %s169
      %s171 = sshll.u32 %s7, 4
      %s172 = int_to_ptr.hbm [resolvable:$true] %s171
      %174 = dma.vmem_to_hbm [thread:$0]  %s170, 128, %s172, [#allocation4]
    $region37: #{tpu_custom_call.1} parent=1 // pred_fallthru
      _
    // Predicated region
    $region38: #{tpu_custom_call.1} parent=1 // pred_check
      _
    $region39: #{tpu_custom_call.1} parent=1 // pred_check_branch
      %176 = sbr.rel (0) target = $region41
    $region40: #{tpu_custom_call.1} parent=1 // pred_region
      %178 = dma.done [#allocation4], 128
    $region41: #{tpu_custom_call.1} parent=1 // pred_fallthru
      _
    %179 = vsyncpa [#allocation3], 1
    %180 = vsyncpa [#allocation4], 1

</llo_original>
